<compile_context>
chip_gen: v6e
topology: v6e:2x2x1
jax: 0.10.0
libtpu: 0.0.40
codegen_flags: <defaults>
</compile_context>

<pallas_src>
import functools

import jax
import jax.numpy as jnp
from jax.experimental import pallas as pl
from jax.experimental.pallas import tpu as pltpu

IN_DIM = 4
HIDDEN = 128
LANES = 128          # padded fc2 output width -> lane-dense (unmasked) stores
NEG_INF = -1e30      # padded-logit fill; exp(NEG_INF - max) underflows to exactly 0


def policy_net_kernel(x_ref, w1_ref, b1_ref, w2_ref, b2_ref, out_ref):
    # x_ref  : (BLOCK_M, 4)      observations slab
    # w1_ref : (4, 128)          b1_ref : (1, 128)
    # w2_ref : (128, 128)        b2_ref : (1, 128)   (cols >= n_actions: W=0, b=-1e30)
    # out_ref: (BLOCK_M, 128)    lane-dense softmax slab
    x = x_ref[...]

    # fc1 + ReLU (MXU)
    h = jnp.dot(x, w1_ref[...], preferred_element_type=jnp.float32) + b1_ref[...]
    h = jnp.maximum(h, 0.0)

    # fc2 (MXU, lane-dense: padded to 128 output lanes)
    logits = jnp.dot(h, w2_ref[...], preferred_element_type=jnp.float32) + b2_ref[...]

    # softmax over the 128 lanes; padded lanes carry -1e30 -> probability exactly 0
    m = jnp.max(logits, axis=-1, keepdims=True)
    e = jnp.exp(logits - m)
    denom = jnp.sum(e, axis=-1, keepdims=True)
    out_ref[...] = (e * pl.reciprocal(denom, approx=False)).astype(out_ref.dtype)


def _round_up(n, m):
    return ((n + m - 1) // m) * m


def init_params(key, in_dim=IN_DIM, hidden=HIDDEN, n_actions=2):
    """PyTorch-Linear-style init U(-1/sqrt(fan_in), 1/sqrt(fan_in)).

    Weights stored as (in_features, out_features) so the kernel computes y = x @ W + b.
    """
    k1, k2, k3, k4 = jax.random.split(key, 4)
    bound1 = 1.0 / jnp.sqrt(in_dim)
    bound2 = 1.0 / jnp.sqrt(hidden)
    w1 = jax.random.uniform(k1, (in_dim, hidden), jnp.float32, -bound1, bound1)
    b1 = jax.random.uniform(k2, (1, hidden), jnp.float32, -bound1, bound1)
    w2 = jax.random.uniform(k3, (hidden, n_actions), jnp.float32, -bound2, bound2)
    b2 = jax.random.uniform(k4, (1, n_actions), jnp.float32, -bound2, bound2)
    return w1, b1, w2, b2


def prepare_params(w1, b1, w2, b2):
    """One-time (init-time, not per-call) padding of fc2 to LANES output lanes."""
    hidden, n_actions = w2.shape
    w2p = jnp.zeros((hidden, LANES), jnp.float32).at[:, :n_actions].set(w2)
    b2p = jnp.full((1, LANES), NEG_INF, jnp.float32).at[:, :n_actions].set(
        jnp.reshape(b2, (1, n_actions)))
    return (w1.astype(jnp.float32),
            jnp.reshape(b1, (1, hidden)).astype(jnp.float32),
            w2p, b2p, int(n_actions))


@functools.partial(jax.jit, static_argnames=("n_actions", "block_m"))
def _policy_net_pallas(x, w1, b1, w2p, b2p, *, n_actions, block_m):
    batch = x.shape[0]
    padded = _round_up(batch, block_m)
    if padded != batch:
        x = jnp.pad(x, ((0, padded - batch), (0, 0)))

    out = pl.pallas_call(
        policy_net_kernel,
        out_shape=jax.ShapeDtypeStruct((padded, LANES), jnp.float32),
        grid=(padded // block_m,),
        in_specs=[
            # Batched observations: a new slab per grid step.
            pl.BlockSpec((block_m, IN_DIM), lambda i: (i, 0)),
            # Weights/biases: constant index_map -> DMA'd once, VMEM-resident.
            pl.BlockSpec(w1.shape, lambda i: (0, 0)),
            pl.BlockSpec(b1.shape, lambda i: (0, 0)),
            pl.BlockSpec(w2p.shape, lambda i: (0, 0)),
            pl.BlockSpec(b2p.shape, lambda i: (0, 0)),
        ],
        out_specs=pl.BlockSpec((block_m, LANES), lambda i: (i, 0)),
        compiler_params=pltpu.CompilerParams(
            dimension_semantics=("parallel",)),  # v7x: split batch across 2 TCs
    )(x, w1, b1, w2p, b2p)
    return out[:batch, :n_actions]


def policy_net_forward_batched(x, params, *, block_m=None):
    """x: (B, 4) float32 observations. Returns (B, n_actions) softmax probabilities."""
    w1, b1, w2p, b2p, n_actions = params
    x = jnp.asarray(x, jnp.float32)
    batch = x.shape[0]
    if block_m is None:
        block_m = 128 if batch >= 128 else _round_up(max(batch, 1), 8)
    return _policy_net_pallas(x, w1, b1, w2p, b2p,
                              n_actions=n_actions, block_m=block_m)


def policy_net_forward(x, params):
    """Exact module semantics: x.view(1, -1) -> softmax probs of shape (1, n_actions)."""
    x2 = jnp.reshape(jnp.asarray(x, jnp.float32), (1, IN_DIM))
    return policy_net_forward_batched(x2, params, block_m=8)


if __name__ == "__main__":
    key = jax.random.PRNGKey(0)
    kx, kb, kp = jax.random.split(key, 3)

    n_actions = 2
    w1, b1, w2, b2 = init_params(kp, n_actions=n_actions)
    params = prepare_params(w1, b1, w2, b2)

    # --- single-observation path (exact module semantics: x.view(1, -1)) ---
    x1 = jax.random.normal(kx, (IN_DIM,), jnp.float32)
    out1 = jax.block_until_ready(policy_net_forward(x1, params))
    ref1 = jax.nn.softmax(
        jnp.maximum(jnp.reshape(x1, (1, -1)) @ w1 + b1, 0.0) @ w2 + b2, axis=-1)
    assert out1.shape == (1, n_actions)
    assert jnp.allclose(jnp.sum(out1, axis=-1), 1.0, atol=1e-5)
    assert jnp.allclose(out1, ref1, atol=1e-5)

    # --- batched rollout path (amortizes dispatch / weight DMA across observations) ---
    xb = jax.random.normal(kb, (16, IN_DIM), jnp.float32)
    outb = jax.block_until_ready(policy_net_forward_batched(xb, params))
    refb = jax.nn.softmax(jnp.maximum(xb @ w1 + b1, 0.0) @ w2 + b2, axis=-1)
    assert outb.shape == (16, n_actions)
    assert jnp.allclose(jnp.sum(outb, axis=-1), 1.0, atol=1e-5)
    assert jnp.allclose(outb, refb, atol=1e-5)

    print("KERNEL_OK")
</pallas_src>

<mosaic_0001>
module attributes {stable_mosaic.version = 11 : i64} {
  func.func @policy_net_kernel(%arg0: i32, %arg1: memref<8x4xf32, #tpu.memory_space<vmem>>, %arg2: memref<4x128xf32, #tpu.memory_space<vmem>>, %arg3: memref<1x128xf32, #tpu.memory_space<vmem>>, %arg4: memref<128x128xf32, #tpu.memory_space<vmem>>, %arg5: memref<1x128xf32, #tpu.memory_space<vmem>>, %arg6: memref<8x128xf32, #tpu.memory_space<vmem>>) attributes {dimension_semantics = [#tpu.dimension_semantics<parallel>], iteration_bounds = array<i64: 1>, scalar_prefetch = 0 : i64, scratch_operands = 0 : i64, tpu.core_type = #tpu.core_type<tc>, window_params = [{transform_indices = @transform_0, window_bounds = array<i64: 8, 4>}, {pipeline_mode = #tpu.pipeline_mode<synchronous>, transform_indices = @transform_1, window_bounds = array<i64: 4, 128>}, {pipeline_mode = #tpu.pipeline_mode<synchronous>, transform_indices = @transform_2, window_bounds = array<i64: 1, 128>}, {pipeline_mode = #tpu.pipeline_mode<synchronous>, transform_indices = @transform_3, window_bounds = array<i64: 128, 128>}, {pipeline_mode = #tpu.pipeline_mode<synchronous>, transform_indices = @transform_4, window_bounds = array<i64: 1, 128>}, {transform_indices = @transform_5, window_bounds = array<i64: 8, 128>}]} {
    %c0 = arith.constant 0 : index
    %c0_0 = arith.constant 0 : index
    %0 = vector.load %arg1[%c0, %c0_0] : memref<8x4xf32, #tpu.memory_space<vmem>>, vector<8x4xf32>
    %c0_1 = arith.constant 0 : index
    %c0_2 = arith.constant 0 : index
    %1 = vector.load %arg2[%c0_1, %c0_2] : memref<4x128xf32, #tpu.memory_space<vmem>>, vector<4x128xf32>
    %cst = arith.constant dense<0.000000e+00> : vector<8x128xf32>
    %2 = tpu.matmul %0, %1, %cst {dimension_numbers = #tpu.dot_dimension_numbers<[1], [0], [0], [1], [0, 0, 1, 1], [], []>} : vector<8x4xf32>, vector<4x128xf32>, vector<8x128xf32> -> vector<8x128xf32>
    %c0_3 = arith.constant 0 : index
    %c0_4 = arith.constant 0 : index
    %3 = vector.load %arg3[%c0_3, %c0_4] : memref<1x128xf32, #tpu.memory_space<vmem>>, vector<1x128xf32>
    %4 = vector.broadcast %3 : vector<1x128xf32> to vector<8x128xf32>
    %5 = arith.addf %2, %4 : vector<8x128xf32>
    %cst_5 = arith.constant 0.000000e+00 : f32
    %6 = vector.broadcast %cst_5 : f32 to vector<8x128xf32>
    %7 = arith.maximumf %5, %6 : vector<8x128xf32>
    %c0_6 = arith.constant 0 : index
    %c0_7 = arith.constant 0 : index
    %8 = vector.load %arg4[%c0_6, %c0_7] : memref<128x128xf32, #tpu.memory_space<vmem>>, vector<128x128xf32>
    %cst_8 = arith.constant dense<0.000000e+00> : vector<8x128xf32>
    %9 = tpu.matmul %7, %8, %cst_8 {dimension_numbers = #tpu.dot_dimension_numbers<[1], [0], [0], [1], [0, 0, 1, 1], [], []>} : vector<8x128xf32>, vector<128x128xf32>, vector<8x128xf32> -> vector<8x128xf32>
    %c0_9 = arith.constant 0 : index
    %c0_10 = arith.constant 0 : index
    %10 = vector.load %arg5[%c0_9, %c0_10] : memref<1x128xf32, #tpu.memory_space<vmem>>, vector<1x128xf32>
    %11 = vector.broadcast %10 : vector<1x128xf32> to vector<8x128xf32>
    %12 = arith.addf %9, %11 : vector<8x128xf32>
    %cst_11 = arith.constant dense<0xFF800000> : vector<8xf32>
    %13 = vector.multi_reduction <maximumf>, %12, %cst_11 [1] : vector<8x128xf32> to vector<8xf32>
    %14 = vector.shape_cast %13 : vector<8xf32> to vector<8x1xf32>
    %15 = vector.broadcast %14 : vector<8x1xf32> to vector<8x128xf32>
    %16 = arith.subf %12, %15 : vector<8x128xf32>
    %17 = math.exp %16 : vector<8x128xf32>
    %cst_12 = arith.constant dense<0.000000e+00> : vector<8xf32>
    %18 = vector.multi_reduction <add>, %17, %cst_12 [1] : vector<8x128xf32> to vector<8xf32>
    %19 = vector.shape_cast %18 : vector<8xf32> to vector<8x1xf32>
    %20 = tpu.reciprocal %19 : vector<8x1xf32> -> vector<8x1xf32>
    %21 = vector.broadcast %20 : vector<8x1xf32> to vector<8x128xf32>
    %22 = arith.mulf %17, %21 : vector<8x128xf32>
    %c0_13 = arith.constant 0 : index
    %c0_14 = arith.constant 0 : index
    %23 = vector.load %arg6[%c0_13, %c0_14] : memref<8x128xf32, #tpu.memory_space<vmem>>, vector<8x128xf32>
    tpu.vector_store %arg6[%c0_13, %c0_14], %22 {strides = array<i32>} : memref<8x128xf32, #tpu.memory_space<vmem>>, vector<8x128xf32>,
    return
  }
  func.func @transform_0(%arg0: i32) -> (i32, i32) {
    %c0_i32 = arith.constant 0 : i32
    %c0_i32_0 = arith.constant 0 : i32
    return %arg0, %c0_i32 : i32, i32
  }
  func.func @transform_1(%arg0: i32) -> (i32, i32) {
    %c0_i32 = arith.constant 0 : i32
    %c0_i32_0 = arith.constant 0 : i32
    %c0_i32_1 = arith.constant 0 : i32
    return %c0_i32, %c0_i32_0 : i32, i32
  }
  func.func @transform_2(%arg0: i32) -> (i32, i32) {
    %c0_i32 = arith.constant 0 : i32
    %c0_i32_0 = arith.constant 0 : i32
    %c0_i32_1 = arith.constant 0 : i32
    return %c0_i32, %c0_i32_0 : i32, i32
  }
  func.func @transform_3(%arg0: i32) -> (i32, i32) {
    %c0_i32 = arith.constant 0 : i32
    %c0_i32_0 = arith.constant 0 : i32
    %c0_i32_1 = arith.constant 0 : i32
    return %c0_i32, %c0_i32_0 : i32, i32
  }
  func.func @transform_4(%arg0: i32) -> (i32, i32) {
    %c0_i32 = arith.constant 0 : i32
    %c0_i32_0 = arith.constant 0 : i32
    %c0_i32_1 = arith.constant 0 : i32
    return %c0_i32, %c0_i32_0 : i32, i32
  }
  func.func @transform_5(%arg0: i32) -> (i32, i32) {
    %c0_i32 = arith.constant 0 : i32
    %c0_i32_0 = arith.constant 0 : i32
    return %arg0, %c0_i32 : i32, i32
  }
}

</mosaic_0001>

<llo_original>
// kernel: _policy_net_pallas.1
$region0: #{_policy_net_pallas.1}
  #allocation0 [shape = 'u32[]', space=smem, size = 0x4, offset = 0x4, fixed_abs, tag = 'smem constant byte address 0x4 - core index']
  #allocation1 [shape = 'u32[144,128]{1,0:T(1,128)}', space=vmem, size = 0x12000, scoped, tag = 'internal scratch']
  %s0 = inlined_call_operand.vmem [shape: f32[8,4], index: 0, kind: input, shape index: {}]
  %s1 = inlined_call_operand.vmem [shape: f32[4,128], index: 1, kind: input, shape index: {}]
  %s2 = inlined_call_operand.vmem [shape: f32[1,128], index: 2, kind: input, shape index: {}]
  %s3 = inlined_call_operand.hbm [shape: f32[128,128], index: 3, kind: input, shape index: {}]
  %s4 = inlined_call_operand.vmem [shape: f32[1,128], index: 4, kind: input, shape index: {}]
  %s5 = inlined_call_operand.vmem [shape: f32[8,128], index: 5, kind: output, shape index: {}]
  %s6 = sld [smem:[#allocation0]]
  $region34: #{_policy_net_pallas.1} parent=0
    _
  %s8 = ssub.s32 1, %s6
  %s9 = scalar_select 0, %s8, %s6
  $region1: #{_policy_net_pallas.1} parent=0
    #allocation2 [shape = 'u8[65536]{0}', space=vmem, size = 0x10000, scoped, tag = 'input window, operand 3, single buffered']
    #allocation3 [shape = 's32[1]{0}', space=sflag, size = 0x4, scoped, tag = 'scoped memory for _policy_net_pallas.1']
    %10 = vsyncpa [#allocation3], 0
    // Predicated region
    $region2: #{_policy_net_pallas.1} parent=1 // pred_check
      _
    $region3: #{_policy_net_pallas.1} parent=1 // pred_check_branch
      %12 = sbr.rel (0) target = $region5
    $region4: #{_policy_net_pallas.1} parent=1 // pred_region
      _
    $region5: #{_policy_net_pallas.1} parent=1 // pred_fallthru
      _
    // Predicated region
    $region6: #{_policy_net_pallas.1} parent=1 // pred_check
      _
    $region7: #{_policy_net_pallas.1} parent=1 // pred_check_branch
      %14 = sbr.rel (0) target = $region9
    $region8: #{_policy_net_pallas.1} parent=1 // pred_region
      _
    $region9: #{_policy_net_pallas.1} parent=1 // pred_fallthru
      _
    // Predicated region
    $region10: #{_policy_net_pallas.1} parent=1 // pred_check
      _
    $region11: #{_policy_net_pallas.1} parent=1 // pred_check_branch
      %16 = sbr.rel (0) target = $region13
    $region12: #{_policy_net_pallas.1} parent=1 // pred_region
      _
    $region13: #{_policy_net_pallas.1} parent=1 // pred_fallthru
      _
    // Predicated region
    $region14: #{_policy_net_pallas.1} parent=1 // pred_check
      _
    $region15: #{_policy_net_pallas.1} parent=1 // pred_check_branch
      %18 = sbr.rel (0) target = $region17
    $region16: #{_policy_net_pallas.1} parent=1 // pred_region
      %s20 = ssub.s32 2048, 2048
      %21 = vsyncadd [#allocation3], %s20
      %s22 = sshll.u32 [#allocation2], 4
      %s23 = int_to_ptr.vmem [resolvable:$true] %s22
      %28 = dma.hbm_to_vmem [thread:$0]  %s3, 2048, %s23, [#allocation3], 128, 128, 8
    $region17: #{_policy_net_pallas.1} parent=1 // pred_fallthru
      _
    // Predicated region
    $region18: #{_policy_net_pallas.1} parent=1 // pred_check
      _
    $region19: #{_policy_net_pallas.1} parent=1 // pred_check_branch
      %30 = sbr.rel (0) target = $region21
    $region20: #{_policy_net_pallas.1} parent=1 // pred_region
      _
    $region21: #{_policy_net_pallas.1} parent=1 // pred_fallthru
      _
    // Predicated region
    $region22: #{_policy_net_pallas.1} parent=1 // pred_check
      _
    $region23: #{_policy_net_pallas.1} parent=1 // pred_check_branch
      %32 = sbr.rel (0) target = $region25
    $region24: #{_policy_net_pallas.1} parent=1 // pred_region
      %33 = dma.done [#allocation3], 2048
    $region25: #{_policy_net_pallas.1} parent=1 // pred_fallthru
      _
    %v34 = vld [vmem:[%s0] sm:$0xff]
    %v35 = vld [vmem:[%s1] sm:$0xf]
    %v36 = vld [vmem:[%s2] sm:$0x1]
    %v38 = vlaneseq
    %v39 = vshrl.u32 %v38, 7
    %v40 = vsub.s32 0, %v39
    %v41 = vrot.slane %v36, %v40
    %vm43 = vcmask 31744
    %v45 = vsel %vm43, %v34, 0
    %vm47 = vcmask 1043456
    %v49 = vsel %vm47, %v35, 0
    %51 = vmatprep.subr.mxu0 0.0
    %52 = vmatpush1.msra.mxu0 0.0
    %53 = vmatprep.subr.mxu0 0.0
    %54 = vmatpush1.msra.mxu0 0.0
    %55 = vmatprep.subr.mxu0 0.0
    %56 = vmatpush1.msra.mxu0 0.0
    %57 = vmatprep.subr.mxu0 0.0
    %58 = vmatpush1.msra.mxu0 0.0
    %59 = vmatprep.subr.mxu0 0.0
    %60 = vmatpush1.msra.mxu0 0.0
    %61 = vmatprep.subr.mxu0 0.0
    %62 = vmatpush1.msra.mxu0 0.0
    %63 = vmatprep.subr.mxu0 0.0
    %64 = vmatpush1.msra.mxu0 0.0
    %65 = vmatprep.subr.mxu0 0.0
    %66 = vmatpush1.msra.mxu0 0.0
    %67 = vmatprep.subr.mxu0 0.0
    %68 = vmatpush1.msra.mxu0 0.0
    %69 = vmatprep.subr.mxu0 0.0
    %70 = vmatpush1.msra.mxu0 0.0
    %71 = vmatprep.subr.mxu0 0.0
    %72 = vmatpush1.msra.mxu0 0.0
    %73 = vmatprep.subr.mxu0 0.0
    %74 = vmatpush1.msra.mxu0 0.0
    %75 = vmatprep.subr.mxu0 0.0
    %76 = vmatpush1.msra.mxu0 0.0
    %77 = vmatprep.subr.mxu0 0.0
    %78 = vmatpush1.msra.mxu0 0.0
    %79 = vmatprep.subr.mxu0 0.0
    %80 = vmatpush1.msra.mxu0 0.0
    %81 = vmatprep.subr.mxu0 0.0
    %82 = vmatpush1.msra.mxu0 %v49
    %83 = vmatprep.subr.mxu0 0.0
    %84 = vmatpush2.msra.mxu0 0.0
    %85 = vmatprep.subr.mxu0 0.0
    %86 = vmatpush2.msra.mxu0 0.0
    %87 = vmatprep.subr.mxu0 0.0
    %88 = vmatpush2.msra.mxu0 0.0
    %89 = vmatprep.subr.mxu0 0.0
    %90 = vmatpush2.msra.mxu0 0.0
    %91 = vmatprep.subr.mxu0 0.0
    %92 = vmatpush2.msra.mxu0 0.0
    %93 = vmatprep.subr.mxu0 0.0
    %94 = vmatpush2.msra.mxu0 0.0
    %95 = vmatprep.subr.mxu0 0.0
    %96 = vmatpush2.msra.mxu0 0.0
    %97 = vmatprep.subr.mxu0 0.0
    %98 = vmatpush2.msra.mxu0 0.0
    %99 = vmatprep.subr.mxu0 0.0
    %100 = vmatpush2.msra.mxu0 0.0
    %101 = vmatprep.subr.mxu0 0.0
    %102 = vmatpush2.msra.mxu0 0.0
    %103 = vmatprep.subr.mxu0 0.0
    %104 = vmatpush2.msra.mxu0 0.0
    %105 = vmatprep.subr.mxu0 0.0
    %106 = vmatpush2.msra.mxu0 0.0
    %107 = vmatprep.subr.mxu0 0.0
    %108 = vmatpush2.msra.mxu0 0.0
    %109 = vmatprep.subr.mxu0 0.0
    %110 = vmatpush2.msra.mxu0 0.0
    %111 = vmatprep.subr.mxu0 0.0
    %112 = vmatpush2.msra.mxu0 0.0
    %113 = vmatprep.subr.mxu0 0.0
    %114 = vmatpush2.msra.mxu0 0.0
    %115 = vmatprep.mubr.f32.mxu0 0.0
    %116 = vmatmul.mubr.f32.gmra.mxu0 %v45
    %v117 = vpop.f32.mrf.mxu0
    %v118 = vadd.f32 %v41, %v117
    %v119 = vpop.f32.mrf.mxu0
    %120 = vdwg.mxu0
    %v121 = vmax.f32 %v118, 0.0
    %v122 = vld [vmem:[#allocation2] sm:$0xff]
    %v123 = vld [vmem:[#allocation2 + $0x8] sm:$0xff]
    %v124 = vld [vmem:[#allocation2 + $0x10] sm:$0xff]
    %v125 = vld [vmem:[#allocation2 + $0x18] sm:$0xff]
    %v126 = vld [vmem:[#allocation2 + $0x20] sm:$0xff]
    %v127 = vld [vmem:[#allocation2 + $0x28] sm:$0xff]
    %v128 = vld [vmem:[#allocation2 + $0x30] sm:$0xff]
    %v129 = vld [vmem:[#allocation2 + $0x38] sm:$0xff]
    %v130 = vld [vmem:[#allocation2 + $0x40] sm:$0xff]
    %v131 = vld [vmem:[#allocation2 + $0x48] sm:$0xff]
    %v132 = vld [vmem:[#allocation2 + $0x50] sm:$0xff]
    %v133 = vld [vmem:[#allocation2 + $0x58] sm:$0xff]
    %v134 = vld [vmem:[#allocation2 + $0x60] sm:$0xff]
    %v135 = vld [vmem:[#allocation2 + $0x68] sm:$0xff]
    %v136 = vld [vmem:[#allocation2 + $0x70] sm:$0xff]
    %v137 = vld [vmem:[#allocation2 + $0x78] sm:$0xff]
    %v138 = vld [vmem:[%s4] sm:$0x1]
    %v140 = vlaneseq
    %v141 = vshrl.u32 %v140, 7
    %v142 = vsub.s32 0, %v141
    %v143 = vrot.slane %v138, %v142
    %145 = vmatprep.subr.mxu0 0.0
    %146 = vmatpush1.msra.mxu0 %v137
    %147 = vmatprep.subr.mxu0 0.0
    %148 = vmatpush1.msra.mxu0 %v136
    %149 = vmatprep.subr.mxu0 0.0
    %150 = vmatpush1.msra.mxu0 %v135
    %151 = vmatprep.subr.mxu0 0.0
    %152 = vmatpush1.msra.mxu0 %v134
    %153 = vmatprep.subr.mxu0 0.0
    %154 = vmatpush1.msra.mxu0 %v133
    %155 = vmatprep.subr.mxu0 0.0
    %156 = vmatpush1.msra.mxu0 %v132
    %157 = vmatprep.subr.mxu0 0.0
    %158 = vmatpush1.msra.mxu0 %v131
    %159 = vmatprep.subr.mxu0 0.0
    %160 = vmatpush1.msra.mxu0 %v130
    %161 = vmatprep.subr.mxu0 0.0
    %162 = vmatpush1.msra.mxu0 %v129
    %163 = vmatprep.subr.mxu0 0.0
    %164 = vmatpush1.msra.mxu0 %v128
    %165 = vmatprep.subr.mxu0 0.0
    %166 = vmatpush1.msra.mxu0 %v127
    %167 = vmatprep.subr.mxu0 0.0
    %168 = vmatpush1.msra.mxu0 %v126
    %169 = vmatprep.subr.mxu0 0.0
    %170 = vmatpush1.msra.mxu0 %v125
    %171 = vmatprep.subr.mxu0 0.0
    %172 = vmatpush1.msra.mxu0 %v124
    %173 = vmatprep.subr.mxu0 0.0
    %174 = vmatpush1.msra.mxu0 %v123
    %175 = vmatprep.subr.mxu0 0.0
    %176 = vmatpush1.msra.mxu0 %v122
    %177 = vmatprep.subr.mxu0 0.0
    %178 = vmatpush2.msra.mxu0 0.0
    %179 = vmatprep.subr.mxu0 0.0
    %180 = vmatpush2.msra.mxu0 0.0
    %181 = vmatprep.subr.mxu0 0.0
    %182 = vmatpush2.msra.mxu0 0.0
    %183 = vmatprep.subr.mxu0 0.0
    %184 = vmatpush2.msra.mxu0 0.0
    %185 = vmatprep.subr.mxu0 0.0
    %186 = vmatpush2.msra.mxu0 0.0
    %187 = vmatprep.subr.mxu0 0.0
    %188 = vmatpush2.msra.mxu0 0.0
    %189 = vmatprep.subr.mxu0 0.0
    %190 = vmatpush2.msra.mxu0 0.0
    %191 = vmatprep.subr.mxu0 0.0
    %192 = vmatpush2.msra.mxu0 0.0
    %193 = vmatprep.subr.mxu0 0.0
    %194 = vmatpush2.msra.mxu0 0.0
    %195 = vmatprep.subr.mxu0 0.0
    %196 = vmatpush2.msra.mxu0 0.0
    %197 = vmatprep.subr.mxu0 0.0
    %198 = vmatpush2.msra.mxu0 0.0
    %199 = vmatprep.subr.mxu0 0.0
    %200 = vmatpush2.msra.mxu0 0.0
    %201 = vmatprep.subr.mxu0 0.0
    %202 = vmatpush2.msra.mxu0 0.0
    %203 = vmatprep.subr.mxu0 0.0
    %204 = vmatpush2.msra.mxu0 0.0
    %205 = vmatprep.subr.mxu0 0.0
    %206 = vmatpush2.msra.mxu0 0.0
    %207 = vmatprep.subr.mxu0 0.0
    %208 = vmatpush2.msra.mxu0 0.0
    %209 = vmatprep.mubr.f32.mxu0 0.0
    %210 = vmatmul.mubr.f32.gmra.mxu0 %v121
    %v211 = vpop.f32.mrf.mxu0
    %v212 = vadd.f32 %v143, %v211
    %v213 = vpop.f32.mrf.mxu0
    %214 = vdwg.mxu0
    %215 = vmax.xlane.f32.xlu0 %v212
    %v216 = vpop.xlane.xlu0 %215
    %v217 = vsub.f32 %v212, %v216
    %v218 = vmul.f32 %v217, 1.442695
    %v219 = vpow.pop %v218
    %220 = vadd.xlane.f32.xlu0 %v219
    %v221 = vpop.xlane.xlu0 %220
    %v222 = vrcp.pop %v221
    %v223 = vmul.f32 %v219, %v222
    %224 = vst [vmem:[%s5] sm:$0xff] %v223
    // Predicated region
    $region26: #{_policy_net_pallas.1} parent=1 // pred_check
      _
    $region27: #{_policy_net_pallas.1} parent=1 // pred_check_branch
      %226 = sbr.rel (0) target = $region29
    $region28: #{_policy_net_pallas.1} parent=1 // pred_region
      _
    $region29: #{_policy_net_pallas.1} parent=1 // pred_fallthru
      _
    // Predicated region
    $region30: #{_policy_net_pallas.1} parent=1 // pred_check
      _
    $region31: #{_policy_net_pallas.1} parent=1 // pred_check_branch
      %228 = sbr.rel (0) target = $region33
    $region32: #{_policy_net_pallas.1} parent=1 // pred_region
      _
    $region33: #{_policy_net_pallas.1} parent=1 // pred_fallthru
      _
    %229 = vsyncpa [#allocation3], 1

</llo_original>
